<compile_context>
chip_gen: v6e
topology: v6e:2x2x1
jax: 0.10.0
libtpu: 0.0.40
codegen_flags: <defaults>
</compile_context>

<pallas_src>
import math

import jax
import jax.numpy as jnp
from jax.experimental import pallas as pl
from jax.experimental.pallas import tpu as pltpu


LN_EPS = 1e-6


def _layernorm(x, gamma, beta, eps=LN_EPS):
    mu = jnp.mean(x, axis=-1, keepdims=True)
    var = jnp.mean((x - mu) ** 2, axis=-1, keepdims=True)
    return (x - mu) * jax.lax.rsqrt(var + eps) * gamma + beta


def _gelu(x):
    # TODO(synk): PyTorch nn.GELU defaults to the exact erf formulation; the tanh approximation
    # is used here for guaranteed Mosaic lowering.
    return jax.nn.gelu(x, approximate=True)


# --------------------- feature probes / per-generation tuning ---------------------

def _probe_single_buffering():
    """True iff this JAX build accepts pipeline_mode=pl.Buffered(1) on a BlockSpec."""
    try:
        def _k(x_ref, o_ref):
            o_ref[...] = x_ref[...] + 1.0

        out = pl.pallas_call(
            _k,
            out_shape=jax.ShapeDtypeStruct((8, 128), jnp.float32),
            grid=(2,),
            in_specs=[pl.BlockSpec((8, 128), lambda i: (0, 0),
                                   pipeline_mode=pl.Buffered(1))],
            out_specs=pl.BlockSpec((8, 128), lambda i: (0, 0)),
        )(jnp.zeros((8, 128), jnp.float32))
        jax.block_until_ready(out)
        return True
    except Exception:
        return False


_SINGLE_BUFFER = _probe_single_buffering()


def _query_vmem_limit():
    """~80% of physical VMEM: ~102 MiB on v5e/v6e (128 MiB), ~51 MiB on v7x (64 MiB)."""
    cap = 64 * 1024 * 1024
    try:
        cap = int(pltpu.get_tpu_info().vmem_capacity_bytes)
    except Exception:
        pass
    return min(int(cap * 0.8), 112 * 1024 * 1024)


_VMEM_LIMIT = _query_vmem_limit()


def _compiler_params(dimension_semantics):
    return pltpu.CompilerParams(
        dimension_semantics=dimension_semantics,
        vmem_limit_bytes=_VMEM_LIMIT,
    )


def _const_spec(arr):
    """BlockSpec for a grid-invariant operand; single-buffered when supported (halves the
    VMEM footprint of large resident weights with zero pipelining loss)."""
    nd = arr.ndim
    index_map = lambda *_args, _n=nd: (0,) * _n
    if _SINGLE_BUFFER:
        return pl.BlockSpec(arr.shape, index_map, pipeline_mode=pl.Buffered(1))
    return pl.BlockSpec(arr.shape, index_map)


# --------------------------------- Pallas kernels ---------------------------------

def q_prepass_kernel(x_ref, g_ref, b_ref, w_ref, ws_ref, cos_ref, sin_ref, q_ref):
    """LayerNorm(x) -> full-width Q projection -> RoPE.
    The rotate-half partner is produced by the column-swapped weight copy (ws); the cos/sin
    tables already carry the rotate-half signs and the 1/sqrt(head_dim) attention scale."""
    ln = _layernorm(x_ref[0], g_ref[...], b_ref[...]).astype(jnp.bfloat16)
    qa = jnp.dot(ln, w_ref[...], preferred_element_type=jnp.float32)
    qb = jnp.dot(ln, ws_ref[...], preferred_element_type=jnp.float32)
    q_ref[0] = (qa * cos_ref[...] + qb * sin_ref[...]).astype(jnp.bfloat16)


def kv_prepass_kernel(ctx_ref, g_ref, b_ref, wk_ref, wks_ref, wv_ref, cos_ref, sin_ref,
                      k_ref, v_ref):
    """LayerNorm(context) -> full-width K/V projections -> RoPE on K.  Runs once per layer."""
    ln = _layernorm(ctx_ref[0], g_ref[...], b_ref[...]).astype(jnp.bfloat16)
    ka = jnp.dot(ln, wk_ref[...], preferred_element_type=jnp.float32)
    kb = jnp.dot(ln, wks_ref[...], preferred_element_type=jnp.float32)
    k_ref[0] = (ka * cos_ref[...] + kb * sin_ref[...]).astype(jnp.bfloat16)
    v_ref[0] = jnp.dot(ln, wv_ref[...], preferred_element_type=jnp.float32).astype(jnp.bfloat16)


def attention_kernel(x_ref, q_ref, k_ref, v_ref, wo_ref, bo_ref, o_ref, acc_scr):
    """Per-head attention core.  Heads are the last ('arbitrary') grid axis; each head's
    already-output-projected contribution accumulates into a (tq, C) VMEM scratch."""
    h = pl.program_id(2)

    @pl.when(h == 0)
    def _init():
        acc_scr[...] = jnp.zeros_like(acc_scr)

    q = q_ref[0, 0]                                   # (tq, hd) bf16, RoPE'd + pre-scaled
    k = k_ref[0, 0]                                   # (M,  hd) bf16, RoPE'd
    v = v_ref[0, 0]                                   # (M,  hd) bf16

    s = jax.lax.dot_general(q, k, (((1,), (1,)), ((), ())),
                            preferred_element_type=jnp.float32)       # (tq, M)
    s = s - jnp.max(s, axis=-1, keepdims=True)
    p = jnp.exp(s)
    l = jnp.sum(p, axis=-1, keepdims=True)                            # (tq, 1)
    o_h = jnp.dot(p.astype(jnp.bfloat16), v, preferred_element_type=jnp.float32)  # (tq, hd)
    # normalize AFTER P.V: a (tq, hd) multiply instead of a (tq, M) one; EUP reciprocal.
    o_h = o_h * pl.reciprocal(l, approx=True)

    acc_scr[...] += jnp.dot(o_h.astype(jnp.bfloat16), wo_ref[0],
                            preferred_element_type=jnp.float32)       # (tq, C)

    @pl.when(h == pl.num_programs(2) - 1)
    def _finalize():
        o_ref[0] = x_ref[0] + acc_scr[...] + bo_ref[...]


def ffn_kernel(x_ref, g_ref, b_ref, w1a_ref, b1a_ref, w1g_ref, b1g_ref, w2_ref, b2_ref,
               o_ref, hin_scr, acc_scr):
    """GEGLU FFN tiled over the hidden dim (last grid axis): w1/w2 chunks are streamed and the
    (tq, 2*mid) intermediate never materializes."""
    c = pl.program_id(2)

    @pl.when(c == 0)
    def _init():
        hin_scr[...] = _layernorm(x_ref[0], g_ref[...], b_ref[...]).astype(jnp.bfloat16)
        acc_scr[...] = jnp.zeros_like(acc_scr)

    a = jnp.dot(hin_scr[...], w1a_ref[...], preferred_element_type=jnp.float32) + b1a_ref[...]
    gate = jnp.dot(hin_scr[...], w1g_ref[...], preferred_element_type=jnp.float32) + b1g_ref[...]
    acc_scr[...] += jnp.dot((a * _gelu(gate)).astype(jnp.bfloat16), w2_ref[...],
                            preferred_element_type=jnp.float32)

    @pl.when(c == pl.num_programs(2) - 1)
    def _finalize():
        o_ref[0] = x_ref[0] + acc_scr[...] + b2_ref[...]


# ----------------------------------- wrappers --------------------------------------

def _q_prepass(x, gq, bq, wq, wqs, cos_q, sin_q, *, tq):
    B, Np, C = x.shape
    return pl.pallas_call(
        q_prepass_kernel,
        out_shape=jax.ShapeDtypeStruct((B, Np, C), jnp.bfloat16),
        grid=(B, Np // tq),
        in_specs=[
            pl.BlockSpec((1, tq, C), lambda b, t: (b, t, 0)),
            _const_spec(gq), _const_spec(bq),
            _const_spec(wq), _const_spec(wqs),
            pl.BlockSpec((tq, C), lambda b, t: (t, 0)),
            pl.BlockSpec((tq, C), lambda b, t: (t, 0)),
        ],
        out_specs=pl.BlockSpec((1, tq, C), lambda b, t: (b, t, 0)),
        compiler_params=_compiler_params(("parallel", "parallel")),
    )(x, gq, bq, wq, wqs, cos_q, sin_q)


def _kv_prepass(ctx, gkv, bkv, wk, wks, wv, cos_k, sin_k, *, tm):
    B, M, Cc = ctx.shape
    C = wk.shape[1]
    return pl.pallas_call(
        kv_prepass_kernel,
        out_shape=(jax.ShapeDtypeStruct((B, M, C), jnp.bfloat16),
                   jax.ShapeDtypeStruct((B, M, C), jnp.bfloat16)),
        grid=(B, M // tm),
        in_specs=[
            pl.BlockSpec((1, tm, Cc), lambda b, t: (b, t, 0)),
            _const_spec(gkv), _const_spec(bkv),
            _const_spec(wk), _const_spec(wks), _const_spec(wv),
            pl.BlockSpec((tm, C), lambda b, t: (t, 0)),
            pl.BlockSpec((tm, C), lambda b, t: (t, 0)),
        ],
        out_specs=(pl.BlockSpec((1, tm, C), lambda b, t: (b, t, 0)),
                   pl.BlockSpec((1, tm, C), lambda b, t: (b, t, 0))),
        compiler_params=_compiler_params(("parallel", "parallel")),
    )(ctx, gkv, bkv, wk, wks, wv, cos_k, sin_k)


def _attention(x, q, k, v, wo, bo, *, tq):
    B, Np, C = x.shape
    _, H, M, hd = k.shape
    return pl.pallas_call(
        attention_kernel,
        out_shape=jax.ShapeDtypeStruct((B, Np, C), jnp.float32),
        grid=(B, Np // tq, H),
        in_specs=[
            pl.BlockSpec((1, tq, C), lambda b, t, h: (b, t, 0)),        # x (residual)
            pl.BlockSpec((1, 1, tq, hd), lambda b, t, h: (b, h, t, 0)),  # Q head tile
            pl.BlockSpec((1, 1, M, hd), lambda b, t, h: (b, h, 0, 0)),   # K head
            pl.BlockSpec((1, 1, M, hd), lambda b, t, h: (b, h, 0, 0)),   # V head
            pl.BlockSpec((1, hd, C), lambda b, t, h: (h, 0, 0)),         # Wo head slice
            _const_spec(bo),
        ],
        out_specs=pl.BlockSpec((1, tq, C), lambda b, t, h: (b, t, 0)),
        scratch_shapes=[pltpu.VMEM((tq, C), jnp.float32)],
        compiler_params=_compiler_params(("parallel", "parallel", "arbitrary")),
    )(x, q, k, v, wo, bo)


def _ffn(x, gf, bf, w1a, b1a, w1g, b1g, w2, b2, *, tq, tc):
    B, Np, C = x.shape
    mid = w2.shape[0]
    return pl.pallas_call(
        ffn_kernel,
        out_shape=jax.ShapeDtypeStruct((B, Np, C), jnp.float32),
        grid=(B, Np // tq, mid // tc),
        in_specs=[
            pl.BlockSpec((1, tq, C), lambda b, t, c: (b, t, 0)),
            _const_spec(gf), _const_spec(bf),
            pl.BlockSpec((C, tc), lambda b, t, c: (0, c)),
            pl.BlockSpec((1, tc), lambda b, t, c: (0, c)),
            pl.BlockSpec((C, tc), lambda b, t, c: (0, c)),
            pl.BlockSpec((1, tc), lambda b, t, c: (0, c)),
            pl.BlockSpec((tc, C), lambda b, t, c: (c, 0)),
            _const_spec(b2),
        ],
        out_specs=pl.BlockSpec((1, tq, C), lambda b, t, c: (b, t, 0)),
        scratch_shapes=[pltpu.VMEM((tq, C), jnp.bfloat16),
                        pltpu.VMEM((tq, C), jnp.float32)],
        compiler_params=_compiler_params(("parallel", "parallel", "arbitrary")),
    )(x, gf, bf, w1a, b1a, w1g, b1g, w2, b2)


def transformer_layer(x, context, params, rope_q, rope_k, *, head_dim, tq,
                      block_kv=512, block_mid=512):
    """One TransformerLayer forward.  x: (B, N_pad, C) f32 (N_pad a multiple of tq);
    context: (B, M, Cc) f32 (un-padded).  Returns (B, N_pad, C) f32."""
    B, Np, C = x.shape
    _, M, Cc = context.shape
    hd = head_dim
    H = C // hd
    (gq, bq, wq, wqs, gkv, bkv, wk, wks, wv, wo, bo,
     gf, bf, w1a, b1a, w1g, b1g, w2, b2) = params
    cos_q, sin_q = rope_q
    cos_k, sin_k = rope_k

    tm = block_kv if (M % block_kv == 0) else M
    mid = w2.shape[0]
    tc = block_mid if (mid % block_mid == 0) else mid

    # A) Q pre-pass and B) K/V pre-pass: full-MXU-width projections done once per token.
    q = _q_prepass(x, gq, bq, wq, wqs, cos_q, sin_q, tq=tq)                 # (B, Np, C) bf16
    k, v = _kv_prepass(context, gkv, bkv, wk, wks, wv, cos_k, sin_k, tm=tm)  # (B, M, C) bf16

    # Head split done as a cheap XLA reshuffle in HBM so every Pallas block stays lane-dense.
    q = q.reshape(B, Np, H, hd).transpose(0, 2, 1, 3)                        # (B, H, Np, hd)
    k = k.reshape(B, M, H, hd).transpose(0, 2, 1, 3)                         # (B, H, M, hd)
    v = v.reshape(B, M, H, hd).transpose(0, 2, 1, 3)

    # C) attention core + residual, D) hidden-tiled GEGLU FFN + residual.
    x = _attention(x, q, k, v, wo, bo, tq=tq)
    x = _ffn(x, gf, bf, w1a, b1a, w1g, b1g, w2, b2, tq=tq, tc=tc)
    return x


# ------------------------------ RoPE tables / params --------------------------------

def _rope_half_tables(n, head_dim, scale=10000.0):
    freqs_core = 1.0 / (scale ** (jnp.arange(0, head_dim, 2, dtype=jnp.float32) / head_dim))
    pos = jnp.arange(n, dtype=jnp.float32)
    freqs = pos[:, None] * freqs_core[None, :]                     # (n, head_dim // 2)
    return jnp.cos(freqs), jnp.sin(freqs)


def make_rope_tables(n, head_dim, n_heads, extra_scale=1.0):
    """Full-width (n, n_heads*head_dim) cos/sin tables for the per-head evens-then-odds layout,
    with the rotate-half signs (and optionally the 1/sqrt(hd) attention scale) folded in."""
    cos_h, sin_h = _rope_half_tables(n, head_dim)
    cos = jnp.concatenate([cos_h, cos_h], axis=1) * extra_scale    # (n, hd)
    sin = jnp.concatenate([-sin_h, sin_h], axis=1) * extra_scale   # (n, hd)
    return jnp.tile(cos, (1, n_heads)), jnp.tile(sin, (1, n_heads))


def _head_perms(dim, head_dim):
    """(evens-then-odds permutation, within-head half-swap permutation) over `dim` columns."""
    H = dim // head_dim
    half = head_dim // 2
    perm, swap = [], []
    for h in range(H):
        base = h * head_dim
        perm += [base + d for d in range(0, head_dim, 2)]
        perm += [base + d for d in range(1, head_dim, 2)]
        swap += [base + half + d for d in range(half)]
        swap += [base + d for d in range(half)]
    return jnp.asarray(perm, jnp.int32), jnp.asarray(swap, jnp.int32)


def _trunc_normal(key, shape, std=0.02):
    return std * jax.random.truncated_normal(key, -2.0, 2.0, shape, jnp.float32)


def _uniform_linear(key, fan_in, shape):
    bound = 1.0 / math.sqrt(fan_in)
    return jax.random.uniform(key, shape, jnp.float32, -bound, bound)


def init_layer_params(key, dim, dim_context, head_dim, expansion=4.0):
    """Per-layer parameters laid out for the kernels (bf16 matmul weights, f32 LN/bias)."""
    mid = int(dim * expansion)
    H = dim // head_dim
    ks = jax.random.split(key, 8)

    # torch Linear weights are (out, in); transpose to (in, out) so kernels compute x @ W.
    wq = _trunc_normal(ks[0], (dim, dim)).T
    wk = _trunc_normal(ks[1], (dim, dim_context)).T
    wv = _trunc_normal(ks[2], (dim, dim_context)).T
    wo = _trunc_normal(ks[3], (dim, dim)).T
    bo = jnp.zeros((1, dim), jnp.float32)

    # Per-head evens-then-odds column permutation of Wq/Wk (applied identically to q and k, so
    # attention is unchanged) turns interleaved RoPE into a half rotation; the rotate-half
    # partner comes from a second, column-swapped weight copy (no in-kernel lane shuffles).
    perm, swap = _head_perms(dim, head_dim)
    wq = wq[:, perm]
    wk = wk[:, perm]
    wqs = wq[:, swap]
    wks = wk[:, swap]

    wo3 = wo.reshape(H, head_dim, dim).astype(jnp.bfloat16)          # (H, hd, C)

    gq = jnp.ones((1, dim), jnp.float32); bq = jnp.zeros((1, dim), jnp.float32)
    gkv = jnp.ones((1, dim_context), jnp.float32); bkv = jnp.zeros((1, dim_context), jnp.float32)
    gf = jnp.ones((1, dim), jnp.float32); bf = jnp.zeros((1, dim), jnp.float32)

    # FFN: Linear(dim, 2*mid) -> GEGLU (a = first half, gate = second half) -> Linear(mid, dim)
    w1 = _uniform_linear(ks[4], dim, (2 * mid, dim)).T               # (C, 2*mid)
    b1 = _uniform_linear(ks[5], dim, (2 * mid,))
    w2 = _uniform_linear(ks[6], mid, (dim, mid)).T                   # (mid, C)
    b2 = _uniform_linear(ks[7], mid, (1, dim))
    w1a, w1g = w1[:, :mid], w1[:, mid:]
    b1a, b1g = b1[None, :mid], b1[None, mid:]

    bf16 = lambda a: a.astype(jnp.bfloat16)
    return (gq, bq, bf16(wq), bf16(wqs),
            gkv, bkv, bf16(wk), bf16(wks), bf16(wv),
            wo3, bo, gf, bf,
            bf16(w1a), b1a, bf16(w1g), b1g, bf16(w2), b2)


def transformer_block_batched(x, layer_params, *, head_dim, context=None,
                              block_q=256, block_kv=512, block_mid=512):
    """Mirrors TransformerBlockBatched.forward: every layer's K/V path reads the *original*
    (un-updated) context tensor; x accumulates residual updates layer by layer."""
    if context is None:
        context = x                      # un-padded original x, as in the reference module
    B, N, C = x.shape
    _, M, _ = context.shape
    H = C // head_dim

    # Query tile + padding (cdiv-style grid instead of a single huge tile for ragged N).
    tq = block_q if N >= block_q else max(8, ((N + 7) // 8) * 8)
    n_pad = (-N) % tq
    if n_pad:
        x = jnp.pad(x, ((0, 0), (0, n_pad), (0, 0)))
    Np = N + n_pad

    qscale = 1.0 / math.sqrt(head_dim)
    rope_q = make_rope_tables(Np, head_dim, H, extra_scale=qscale)   # attention scale on Q
    rope_k = make_rope_tables(M, head_dim, H)

    for params in layer_params:
        x = transformer_layer(x, context, params, rope_q, rope_k,
                              head_dim=head_dim, tq=tq,
                              block_kv=block_kv, block_mid=block_mid)
    if n_pad:
        x = x[:, :N]
    return x


# ------------------------------------- main ------------------------------------------

if __name__ == "__main__":
    depth = 2
    B, N, C = 2, 8, 64
    head_dim = 32
    expansion = 4.0

    root = jax.random.PRNGKey(0)
    kx, kp = jax.random.split(root)
    x = jax.random.normal(kx, (B, N, C), jnp.float32)

    layer_keys = jax.random.split(kp, depth)
    layer_params = [init_layer_params(k, C, C, head_dim, expansion) for k in layer_keys]

    out = transformer_block_batched(x, layer_params, head_dim=head_dim)
    out = jax.block_until_ready(out)
    assert out.shape == (B, N, C) and out.dtype == jnp.float32
    assert bool(jnp.isfinite(out).all())
    print("KERNEL_OK")
</pallas_src>

<mosaic_0001>
module attributes {stable_mosaic.version = 11 : i64} {
  func.func @_k(%arg0: i32, %arg1: memref<8x128xf32, #tpu.memory_space<vmem>>, %arg2: memref<8x128xf32, #tpu.memory_space<vmem>>) attributes {dimension_semantics = [#tpu.dimension_semantics<arbitrary>], iteration_bounds = array<i64: 2>, scalar_prefetch = 0 : i64, scratch_operands = 0 : i64, tpu.core_type = #tpu.core_type<tc>, window_params = [{pipeline_mode = #tpu.pipeline_mode<synchronous>, transform_indices = @transform_0, window_bounds = array<i64: 8, 128>}, {pipeline_mode = #tpu.pipeline_mode<synchronous>, transform_indices = @transform_1, window_bounds = array<i64: 8, 128>}]} {
    %c0 = arith.constant 0 : index
    %c0_0 = arith.constant 0 : index
    %0 = vector.load %arg1[%c0, %c0_0] : memref<8x128xf32, #tpu.memory_space<vmem>>, vector<8x128xf32>
    %cst = arith.constant 1.000000e+00 : f32
    %1 = vector.broadcast %cst : f32 to vector<8x128xf32>
    %2 = arith.addf %0, %1 : vector<8x128xf32>
    %c0_1 = arith.constant 0 : index
    %c0_2 = arith.constant 0 : index
    %3 = vector.load %arg2[%c0_1, %c0_2] : memref<8x128xf32, #tpu.memory_space<vmem>>, vector<8x128xf32>
    tpu.vector_store %arg2[%c0_1, %c0_2], %2 {strides = array<i32>} : memref<8x128xf32, #tpu.memory_space<vmem>>, vector<8x128xf32>,
    return
  }
  func.func @transform_0(%arg0: i32) -> (i32, i32) {
    %c0_i32 = arith.constant 0 : i32
    %c0_i32_0 = arith.constant 0 : i32
    %c0_i32_1 = arith.constant 0 : i32
    return %c0_i32, %c0_i32_0 : i32, i32
  }
  func.func @transform_1(%arg0: i32) -> (i32, i32) {
    %c0_i32 = arith.constant 0 : i32
    %c0_i32_0 = arith.constant 0 : i32
    %c0_i32_1 = arith.constant 0 : i32
    return %c0_i32, %c0_i32_0 : i32, i32
  }
}

module attributes {stable_mosaic.version = 11 : i64} {
  func.func @q_prepass_kernel(%arg0: i32, %arg1: i32, %arg2: memref<1x8x64xf32, #tpu.memory_space<vmem>>, %arg3: memref<1x64xf32, #tpu.memory_space<vmem>>, %arg4: memref<1x64xf32, #tpu.memory_space<vmem>>, %arg5: memref<64x64xbf16, #tpu.memory_space<vmem>>, %arg6: memref<64x64xbf16, #tpu.memory_space<vmem>>, %arg7: memref<8x64xf32, #tpu.memory_space<vmem>>, %arg8: memref<8x64xf32, #tpu.memory_space<vmem>>, %arg9: memref<1x8x64xbf16, #tpu.memory_space<vmem>>) attributes {dimension_semantics = [#tpu.dimension_semantics<parallel>, #tpu.dimension_semantics<parallel>], iteration_bounds = array<i64: 2, 1>, scalar_prefetch = 0 : i64, scratch_operands = 0 : i64, tpu.core_type = #tpu.core_type<tc>, window_params = [{transform_indices = @transform_0, window_bounds = array<i64: 1, 8, 64>}, {pipeline_mode = #tpu.pipeline_mode<synchronous>, transform_indices = @transform_1, window_bounds = array<i64: 1, 64>}, {pipeline_mode = #tpu.pipeline_mode<synchronous>, transform_indices = @transform_2, window_bounds = array<i64: 1, 64>}, {pipeline_mode = #tpu.pipeline_mode<synchronous>, transform_indices = @transform_3, window_bounds = array<i64: 64, 64>}, {pipeline_mode = #tpu.pipeline_mode<synchronous>, transform_indices = @transform_4, window_bounds = array<i64: 64, 64>}, {transform_indices = @transform_5, window_bounds = array<i64: 8, 64>}, {transform_indices = @transform_6, window_bounds = array<i64: 8, 64>}, {transform_indices = @transform_7, window_bounds = array<i64: 1, 8, 64>}]} {
    %c0 = arith.constant 0 : index
    %c0_0 = arith.constant 0 : index
    %c0_1 = arith.constant 0 : index
    %0 = vector.load %arg2[%c0, %c0_0, %c0_1] : memref<1x8x64xf32, #tpu.memory_space<vmem>>, vector<1x8x64xf32>
    %1 = vector.shape_cast %0 : vector<1x8x64xf32> to vector<8x64xf32>
    %c0_2 = arith.constant 0 : index
    %c0_3 = arith.constant 0 : index
    %2 = vector.load %arg3[%c0_2, %c0_3] : memref<1x64xf32, #tpu.memory_space<vmem>>, vector<1x64xf32>
    %c0_4 = arith.constant 0 : index
    %c0_5 = arith.constant 0 : index
    %3 = vector.load %arg4[%c0_4, %c0_5] : memref<1x64xf32, #tpu.memory_space<vmem>>, vector<1x64xf32>
    %cst = arith.constant dense<0.000000e+00> : vector<8xf32>
    %4 = vector.multi_reduction <add>, %1, %cst [1] : vector<8x64xf32> to vector<8xf32>
    %5 = vector.shape_cast %4 : vector<8xf32> to vector<8x1xf32>
    %cst_6 = arith.constant 6.400000e+01 : f32
    %6 = vector.broadcast %cst_6 : f32 to vector<8x1xf32>
    %7 = arith.divf %5, %6 : vector<8x1xf32>
    %8 = vector.broadcast %7 : vector<8x1xf32> to vector<8x64xf32>
    %9 = arith.subf %1, %8 : vector<8x64xf32>
    %10 = arith.mulf %9, %9 : vector<8x64xf32>
    %cst_7 = arith.constant dense<0.000000e+00> : vector<8xf32>
    %11 = vector.multi_reduction <add>, %10, %cst_7 [1] : vector<8x64xf32> to vector<8xf32>
    %12 = vector.shape_cast %11 : vector<8xf32> to vector<8x1xf32>
    %cst_8 = arith.constant 6.400000e+01 : f32
    %13 = vector.broadcast %cst_8 : f32 to vector<8x1xf32>
    %14 = arith.divf %12, %13 : vector<8x1xf32>
    %15 = vector.broadcast %7 : vector<8x1xf32> to vector<8x64xf32>
    %16 = arith.subf %1, %15 : vector<8x64xf32>
    %cst_9 = arith.constant 9.99999997E-7 : f32
    %17 = vector.broadcast %cst_9 : f32 to vector<8x1xf32>
    %18 = arith.addf %14, %17 : vector<8x1xf32>
    %19 = math.rsqrt %18 : vector<8x1xf32>
    %20 = vector.broadcast %19 : vector<8x1xf32> to vector<8x64xf32>
    %21 = arith.mulf %16, %20 : vector<8x64xf32>
    %22 = vector.broadcast %2 : vector<1x64xf32> to vector<8x64xf32>
    %23 = arith.mulf %21, %22 : vector<8x64xf32>
    %24 = vector.broadcast %3 : vector<1x64xf32> to vector<8x64xf32>
    %25 = arith.addf %23, %24 : vector<8x64xf32>
    %26 = arith.truncf %25 : vector<8x64xf32> to vector<8x64xbf16>
    %c0_10 = arith.constant 0 : index
    %c0_11 = arith.constant 0 : index
    %27 = vector.load %arg5[%c0_10, %c0_11] : memref<64x64xbf16, #tpu.memory_space<vmem>>, vector<64x64xbf16>
    %cst_12 = arith.constant dense<0.000000e+00> : vector<8x64xf32>
    %28 = tpu.matmul %26, %27, %cst_12 {dimension_numbers = #tpu.dot_dimension_numbers<[1], [0], [0], [1], [0, 0, 1, 1], [], []>} : vector<8x64xbf16>, vector<64x64xbf16>, vector<8x64xf32> -> vector<8x64xf32>
    %c0_13 = arith.constant 0 : index
    %c0_14 = arith.constant 0 : index
    %29 = vector.load %arg6[%c0_13, %c0_14] : memref<64x64xbf16, #tpu.memory_space<vmem>>, vector<64x64xbf16>
    %cst_15 = arith.constant dense<0.000000e+00> : vector<8x64xf32>
    %30 = tpu.matmul %26, %29, %cst_15 {dimension_numbers = #tpu.dot_dimension_numbers<[1], [0], [0], [1], [0, 0, 1, 1], [], []>} : vector<8x64xbf16>, vector<64x64xbf16>, vector<8x64xf32> -> vector<8x64xf32>
    %c0_16 = arith.constant 0 : index
    %c0_17 = arith.constant 0 : index
    %31 = vector.load %arg7[%c0_16, %c0_17] : memref<8x64xf32, #tpu.memory_space<vmem>>, vector<8x64xf32>
    %32 = arith.mulf %28, %31 : vector<8x64xf32>
    %c0_18 = arith.constant 0 : index
    %c0_19 = arith.constant 0 : index
    %33 = vector.load %arg8[%c0_18, %c0_19] : memref<8x64xf32, #tpu.memory_space<vmem>>, vector<8x64xf32>
    %34 = arith.mulf %30, %33 : vector<8x64xf32>
    %35 = arith.addf %32, %34 : vector<8x64xf32>
    %36 = arith.truncf %35 : vector<8x64xf32> to vector<8x64xbf16>
    %c0_20 = arith.constant 0 : index
    %c0_21 = arith.constant 0 : index
    %c0_22 = arith.constant 0 : index
    %37 = vector.load %arg9[%c0_20, %c0_21, %c0_22] : memref<1x8x64xbf16, #tpu.memory_space<vmem>>, vector<1x8x64xbf16>
    %38 = vector.shape_cast %37 : vector<1x8x64xbf16> to vector<8x64xbf16>
    %39 = vector.shape_cast %36 : vector<8x64xbf16> to vector<1x8x64xbf16>
    tpu.vector_store %arg9[%c0_20, %c0_21, %c0_22], %39 {strides = array<i32>} : memref<1x8x64xbf16, #tpu.memory_space<vmem>>, vector<1x8x64xbf16>,
    return
  }
  func.func @transform_0(%arg0: i32, %arg1: i32) -> (i32, i32, i32) {
    %c0_i32 = arith.constant 0 : i32
    %c0_i32_0 = arith.constant 0 : i32
    return %arg0, %arg1, %c0_i32 : i32, i32, i32
  }
  func.func @transform_1(%arg0: i32, %arg1: i32) -> (i32, i32) {
    %c0_i32 = arith.constant 0 : i32
    %c0_i32_0 = arith.constant 0 : i32
    %c0_i32_1 = arith.constant 0 : i32
    return %c0_i32, %c0_i32_0 : i32, i32
  }
  func.func @transform_2(%arg0: i32, %arg1: i32) -> (i32, i32) {
    %c0_i32 = arith.constant 0 : i32
    %c0_i32_0 = arith.constant 0 : i32
    %c0_i32_1 = arith.constant 0 : i32
    return %c0_i32, %c0_i32_0 : i32, i32
  }
  func.func @transform_3(%arg0: i32, %arg1: i32) -> (i32, i32) {
    %c0_i32 = arith.constant 0 : i32
    %c0_i32_0 = arith.constant 0 : i32
    %c0_i32_1 = arith.constant 0 : i32
    return %c0_i32, %c0_i32_0 : i32, i32
  }
  func.func @transform_4(%arg0: i32, %arg1: i32) -> (i32, i32) {
    %c0_i32 = arith.constant 0 : i32
    %c0_i32_0 = arith.constant 0 : i32
    %c0_i32_1 = arith.constant 0 : i32
    return %c0_i32, %c0_i32_0 : i32, i32
  }
  func.func @transform_5(%arg0: i32, %arg1: i32) -> (i32, i32) {
    %c0_i32 = arith.constant 0 : i32
    %c0_i32_0 = arith.constant 0 : i32
    return %arg1, %c0_i32 : i32, i32
  }
  func.func @transform_6(%arg0: i32, %arg1: i32) -> (i32, i32) {
    %c0_i32 = arith.constant 0 : i32
    %c0_i32_0 = arith.constant 0 : i32
    return %arg1, %c0_i32 : i32, i32
  }
  func.func @transform_7(%arg0: i32, %arg1: i32) -> (i32, i32, i32) {
    %c0_i32 = arith.constant 0 : i32
    %c0_i32_0 = arith.constant 0 : i32
    return %arg0, %arg1, %c0_i32 : i32, i32, i32
  }
}

</mosaic_0001>

<llo_original>
// kernel: tpu_custom_call.1
$region0: #{tpu_custom_call.1}
  #allocation0 [shape = 'u32[]', space=smem, size = 0x4, offset = 0x4, fixed_abs, tag = 'smem constant byte address 0x4 - core index']
  #allocation1 [shape = 'u32[144,128]{1,0:T(1,128)}', space=vmem, size = 0x12000, scoped, tag = 'internal scratch']
  %s0 = inlined_call_operand.hbm [shape: f32[8,128], index: 0, kind: input, shape index: {}]
  %s1 = inlined_call_operand.hbm [shape: f32[8,128], index: 1, kind: output, shape index: {}]
  %s2 = sld [smem:[#allocation0]]
  $region41: #{tpu_custom_call.1} parent=0
    _
  %s4 = ssub.s32 1, %s2
  %s5 = scalar_select 0, %s4, %s2
  $region1: #{tpu_custom_call.1} parent=0
    #allocation2 [shape = 'u8[4096]{0}', space=vmem, size = 0x1000, scoped, tag = 'input window, operand 0, single buffered']
    #allocation3 [shape = 's32[2]{0}', space=sflag, size = 0x8, scoped, tag = 'scoped memory for tpu_custom_call.1']
    #allocation4 [shape = 's32[2]{0}', space=sflag, size = 0x8, scoped, tag = 'scoped memory for tpu_custom_call.1']
    #allocation5 [shape = 'u8[4096]{0}', space=vmem, size = 0x1000, scoped, tag = 'output window, operand 0, single buffered']
    %6 = vsyncpa [#allocation3], 0
    %7 = vsyncpa [#allocation4], 0
    loop: start=0, step=1, limit=4
    $region2: #{tpu_custom_call.1} parent=1 // loop_pre_header
      _
    $region3: #{tpu_custom_call.1} parent=1 // loop_header
      %s9 = sphi 0, %s13
      %p10 = scmp.ge.s32.totalorder %s9, 4
      %s17 = sphi 0, %s17
      %s19 = sphi 0, %s17
      %s20 = sphi 0, %s19
      %s34 = sphi 0, %s20
      %s38 = sphi 0, %s38
      %s40 = sphi 0, %s38
      %s41 = sphi 0, %s40
      %s55 = sphi 0, %s41
    $region4: #{tpu_custom_call.1} parent=1 // loop_header_branch
      %12 = sbr.rel (%p10) target = $region8
    $region5: #{tpu_custom_call.1} parent=1 // loop_body
      %s14 = ssub.s32 %s9, 1
      %s15 = ssub.s32 %s9, 2
      %s16 = sadd.s32 %s9, 1
      %s18 = sadd.s32 %s17, 1
      %p21 = scmp.eq.s32.totalorder %s9, 1
      %p22 = scmp.ne.s32.totalorder %s17, %s19
      %p23 = scmp.eq.s32.totalorder %s9, 0
      %p24 = por %p22, %p23
      %p25 = scmp.ne.s32.totalorder %s17, %s19
      %p26 = scmp.eq.s32.totalorder %s14, 1
      %p27 = por %p25, %p26
      %p28 = scmp.ne.s32.totalorder %s19, %s20
      %p29 = scmp.eq.s32.totalorder %s14, 0
      %p30 = por %p28, %p29
      %p31 = scmp.ne.s32.totalorder %s19, %s20
      %p32 = scmp.eq.s32.totalorder %s15, 1
      %p33 = por %p31, %p32
      %p35 = scmp.ne.s32.totalorder %s20, %s34
      %p36 = scmp.eq.s32.totalorder %s15, 0
      %p37 = por %p35, %p36
      %s39 = sadd.s32 %s38, 1
      %p42 = scmp.eq.s32.totalorder %s9, 1
      %p43 = scmp.ne.s32.totalorder %s38, %s40
      %p44 = scmp.eq.s32.totalorder %s9, 0
      %p45 = por %p43, %p44
      %p46 = scmp.ne.s32.totalorder %s38, %s40
      %p47 = scmp.eq.s32.totalorder %s14, 1
      %p48 = por %p46, %p47
      %p49 = scmp.ne.s32.totalorder %s40, %s41
      %p50 = scmp.eq.s32.totalorder %s14, 0
      %p51 = por %p49, %p50
      %p52 = scmp.ne.s32.totalorder %s40, %s41
      %p53 = scmp.eq.s32.totalorder %s15, 1
      %p54 = por %p52, %p53
      %p56 = scmp.ne.s32.totalorder %s41, %s55
      %p57 = scmp.eq.s32.totalorder %s15, 0
      %p58 = por %p56, %p57
      %p59 = scmp.le.s32.totalorder 1, %s9
      %p60 = scmp.lt.s32.totalorder %s9, 3
      %p61 = pnand %p59, %p60
      %p62 = pneg %p61
      // Predicated region
      $region9: #{tpu_custom_call.1} parent=5 // pred_check
        _
      $region10: #{tpu_custom_call.1} parent=5 // pred_check_branch
        %64 = sbr.rel (%p61) target = $region12
      $region11: #{tpu_custom_call.1} parent=5 // pred_region
        %s65 = ssub.s32 %s9, 1
        // Predicated region
        $region13: #{tpu_custom_call.1} parent=11 // pred_check
          %p66 = pneg %p30
        $region14: #{tpu_custom_call.1} parent=11 // pred_check_branch
          %68 = sbr.rel (%p66) target = $region16
        $region15: #{tpu_custom_call.1} parent=11 // pred_region
          %s70 = ssub.s32 128, 128
          %71 = vsyncadd [#allocation3], %s70
          %s73 = sshll.u32 [#allocation2], 4
          %s74 = int_to_ptr.vmem [resolvable:$true] %s73
          %76 = dma.hbm_to_vmem [thread:$0]  %s0, 128, %s74, [#allocation3]
        $region16: #{tpu_custom_call.1} parent=11 // pred_fallthru
          _
      $region12: #{tpu_custom_call.1} parent=5 // pred_fallthru
        _
      %p77 = scmp.lt.s32.totalorder %s9, 2
      // Predicated region
      $region17: #{tpu_custom_call.1} parent=5 // pred_check
        %p78 = pneg %p77
      $region18: #{tpu_custom_call.1} parent=5 // pred_check_branch
        %80 = sbr.rel (%p78) target = $region20
      $region19: #{tpu_custom_call.1} parent=5 // pred_region
        _
      $region20: #{tpu_custom_call.1} parent=5 // pred_fallthru
        _
      %p81 = scmp.le.s32.totalorder 1, %s9
      %p82 = scmp.lt.s32.totalorder %s9, 3
      %p83 = pnand %p81, %p82
      %p84 = pneg %p83
      // Predicated region
      $region21: #{tpu_custom_call.1} parent=5 // pred_check
        _
      $region22: #{tpu_custom_call.1} parent=5 // pred_check_branch
        %86 = sbr.rel (%p83) target = $region24
      $region23: #{tpu_custom_call.1} parent=5 // pred_region
        %s87 = ssub.s32 %s9, 1
        // Predicated region
        $region25: #{tpu_custom_call.1} parent=23 // pred_check
          %p88 = pneg %p30
        $region26: #{tpu_custom_call.1} parent=23 // pred_check_branch
          %90 = sbr.rel (%p88) target = $region28
        $region27: #{tpu_custom_call.1} parent=23 // pred_region
          %91 = dma.done [#allocation3], 128
        $region28: #{tpu_custom_call.1} parent=23 // pred_fallthru
          _
        %p92 = pneg %p30
        %p93 = pneg %p27
        %p94 = pneg %p51
        %p95 = pneg %p48
        %v96 = vld [vmem:[#allocation2] sm:$0xff]
        %v97 = vadd.f32 %v96, 1.0
        %98 = vst [vmem:[#allocation5] sm:$0xff] %v97
        // Predicated region
        $region29: #{tpu_custom_call.1} parent=23 // pred_check
          %p99 = pneg %p48
        $region30: #{tpu_custom_call.1} parent=23 // pred_check_branch
          %101 = sbr.rel (%p99) target = $region32
        $region31: #{tpu_custom_call.1} parent=23 // pred_region
          %s103 = ssub.s32 128, 128
          %104 = vsyncadd [#allocation4], %s103
          %s106 = sshll.u32 [#allocation5], 4
          %s107 = int_to_ptr.vmem [resolvable:$true] %s106
          %109 = dma.vmem_to_hbm [thread:$0]  %s107, 128, %s1, [#allocation4]
        $region32: #{tpu_custom_call.1} parent=23 // pred_fallthru
          _
        // Predicated region
        $region33: #{tpu_custom_call.1} parent=23 // pred_check
          %p110 = pneg %p48
        $region34: #{tpu_custom_call.1} parent=23 // pred_check_branch
          %112 = sbr.rel (%p110) target = $region36
        $region35: #{tpu_custom_call.1} parent=23 // pred_region
          %113 = dma.done [#allocation4], 128
        $region36: #{tpu_custom_call.1} parent=23 // pred_fallthru
          _
      $region24: #{tpu_custom_call.1} parent=5 // pred_fallthru
        _
      %p114 = scmp.le.s32.totalorder 2, %s9
      // Predicated region
      $region37: #{tpu_custom_call.1} parent=5 // pred_check
        %p115 = pneg %p114
      $region38: #{tpu_custom_call.1} parent=5 // pred_check_branch
        %117 = sbr.rel (%p115) target = $region40
      $region39: #{tpu_custom_call.1} parent=5 // pred_region
        %s118 = ssub.s32 %s9, 2
      $region40: #{tpu_custom_call.1} parent=5 // pred_fallthru
        _
    $region6: #{tpu_custom_call.1} parent=1 // loop_footer
      %s13 = sadd.s32 1, %s9
    $region7: #{tpu_custom_call.1} parent=1 // loop_footer_branch
      %8 = sbr.rel target = $region3
    $region8: #{tpu_custom_call.1} parent=1 // loop_exit
      _
    %119 = vsyncpa [#allocation3], 1
    %s120 = scalar_lea.sflag [#allocation3], 1
    %121 = vsyncpa %s120, 1
    %122 = vsyncpa [#allocation4], 1
    %s123 = scalar_lea.sflag [#allocation4], 1
    %124 = vsyncpa %s123, 1

// kernel: tpu_custom_call.1
$region0: #{tpu_custom_call.1}
  #allocation0 [shape = 'u32[]', space=smem, size = 0x4, offset = 0x4, fixed_abs, tag = 'smem constant byte address 0x4 - core index']
  #allocation1 [shape = 'u32[144,128]{1,0:T(1,128)}', space=vmem, size = 0x12000, scoped, tag = 'internal scratch']
  %s0 = inlined_call_operand.hbm [shape: f32[2,8,64], index: 0, kind: input, shape index: {}]
  %s1 = inlined_call_operand.vmem [shape: f32[1,64], index: 1, kind: input, shape index: {}]
  %s2 = inlined_call_operand.hbm [shape: f32[1,64], index: 2, kind: input, shape index: {}]
  %s3 = inlined_call_operand.hbm [shape: bf16[64,64], index: 3, kind: input, shape index: {}]
  %s4 = inlined_call_operand.hbm [shape: bf16[64,64], index: 4, kind: input, shape index: {}]
  %s5 = inlined_call_operand.vmem [shape: f32[8,64], index: 5, kind: input, shape index: {}]
  %s6 = inlined_call_operand.hbm [shape: f32[8,64], index: 6, kind: input, shape index: {}]
  %s7 = inlined_call_operand.hbm [shape: bf16[2,8,64], index: 7, kind: output, shape index: {}]
  %s8 = sld [smem:[#allocation0]]
  $region81: #{tpu_custom_call.1} parent=0
    _
  %s10 = ssub.s32 1, %s8
  %s11 = scalar_select 0, %s10, %s8
  $region1: #{tpu_custom_call.1} parent=0
    #allocation2 [shape = 'u8[8192]{0}', space=vmem, size = 0x2000, scoped, tag = 'input window, operand 0']
    #allocation3 [shape = 's32[2]{0}', space=sflag, size = 0x8, scoped, tag = 'scoped memory for tpu_custom_call.1']
    #allocation4 [shape = 's32[2]{0}', space=sflag, size = 0x8, scoped, tag = 'scoped memory for tpu_custom_call.1']
    #allocation5 [shape = 'u8[512]{0}', space=vmem, size = 0x400, scoped, tag = 'input window, operand 2, single buffered']
    #allocation6 [shape = 's32[1]{0}', space=sflag, size = 0x4, scoped, tag = 'scoped memory for tpu_custom_call.1']
    #allocation7 [shape = 'u8[16384]{0}', space=vmem, size = 0x4000, scoped, tag = 'input window, operand 3, single buffered']
    #allocation8 [shape = 'u8[16384]{0}', space=vmem, size = 0x4000, scoped, tag = 'input window, operand 4, single buffered']
    #allocation9 [shape = 's32[1]{0}', space=sflag, size = 0x4, scoped, tag = 'scoped memory for tpu_custom_call.1']
    #allocation10 [shape = 'u8[4096]{0}', space=vmem, size = 0x1000, scoped, tag = 'input window, operand 6, single buffered']
    #allocation11 [shape = 'u8[4096]{0}', space=vmem, size = 0x1000, scoped, tag = 'output window, operand 0']
    %12 = vsyncpa [#allocation3], 0
    %s13 = scalar_lea.sflag [#allocation3], 1
    %14 = vsyncpa %s13, 0
    %15 = vsyncpa [#allocation6], 0
    %16 = vsyncpa [#allocation9], 0
    %17 = vsyncpa [#allocation4], 0
    %s18 = scalar_lea.sflag [#allocation4], 1
    %19 = vsyncpa %s18, 0
    loop: start=0, step=1, limit=4
    $region2: #{tpu_custom_call.1} parent=1 // loop_pre_header
      _
    $region3: #{tpu_custom_call.1} parent=1 // loop_header
      %s21 = sphi 0, %s25
      %p22 = scmp.ge.s32.totalorder %s21, 4
      %s28 = sphi 0, %s40
      %s29 = sphi 0, %s36
      %s30 = sphi 0, %s28
      %s31 = sphi 0, %s29
      %s32 = sphi 0, %s30
      %s33 = sphi 0, %s31
      %s45 = sphi 0, %s47
      %s48 = sphi 0, %s45
      %s49 = sphi 0, %s48
      %s65 = sphi 0, %s49
      %s69 = sphi 0, %s69
      %s71 = sphi 0, %s69
      %s72 = sphi 0, %s71
      %s86 = sphi 0, %s72
      %s90 = sphi 0, %s90
      %s92 = sphi 0, %s90
      %s93 = sphi 0, %s92
      %s107 = sphi 0, %s93
      %s111 = sphi 0, %s111
      %s113 = sphi 0, %s111
      %s114 = sphi 0, %s113
      %s128 = sphi 0, %s114
      %s132 = sphi 0, %s132
      %s134 = sphi 0, %s132
      %s135 = sphi 0, %s134
      %s149 = sphi 0, %s135
      %s155 = sphi 0, %s157
      %s158 = sphi 0, %s155
      %s159 = sphi 0, %s158
      %s175 = sphi 0, %s159
      %s181 = sphi 0, %s183
      %s184 = sphi 0, %s181
      %s185 = sphi 0, %s184
      %s201 = sphi 0, %s185
      %s209 = sphi 0, %s211
      %s212 = sphi 0, %s209
      %s213 = sphi 0, %s212
      %s229 = sphi 0, %s213
    $region4: #{tpu_custom_call.1} parent=1 // loop_header_branch
      %24 = sbr.rel (%p22) target = $region8
    $region5: #{tpu_custom_call.1} parent=1 // loop_body
      %s26 = ssub.s32 %s21, 1
      %s27 = ssub.s32 %s21, 2
      %s34 = sadd.s32 1, %s29
      %p35 = scmp.ge.s32.totalorder %s34, 1
      %s36 = scalar_select %p35, 0, %s34
      %s37 = sadd.s32 1, %s28
      %s38 = scalar_select %p35, %s37, %s28
      %p39 = scmp.ge.s32.totalorder %s38, 2
      %s40 = scalar_select %p39, 0, %s38
      %s41 = ssub.s32 %s28, %s40
      %s42 = ssub.s32 %s29, %s36
      %s43 = sor.u32 %s41, %s42
      %p44 = scmp.eq.s32.totalorder %s43, 0
      %s46 = sadd.s32 %s45, 1
      %s47 = scalar_select %p44, %s45, %s46
      %p50 = pneg %p44
      %p51 = scmp.eq.s32.totalorder %s21, 1
      %p52 = por %p50, %p51
      %p53 = scmp.ne.s32.totalorder %s45, %s48
      %p54 = scmp.eq.s32.totalorder %s21, 0
      %p55 = por %p53, %p54
      %p56 = scmp.ne.s32.totalorder %s45, %s48
      %p57 = scmp.eq.s32.totalorder %s26, 1
      %p58 = por %p56, %p57
      %p59 = scmp.ne.s32.totalorder %s48, %s49
      %p60 = scmp.eq.s32.totalorder %s26, 0
      %p61 = por %p59, %p60
      %p62 = scmp.ne.s32.totalorder %s48, %s49
      %p63 = scmp.eq.s32.totalorder %s27, 1
      %p64 = por %p62, %p63
      %p66 = scmp.ne.s32.totalorder %s49, %s65
      %p67 = scmp.eq.s32.totalorder %s27, 0
      %p68 = por %p66, %p67
      %s70 = sadd.s32 %s69, 1
      %p73 = scmp.eq.s32.totalorder %s21, 1
      %p74 = scmp.ne.s32.totalorder %s69, %s71
      %p75 = scmp.eq.s32.totalorder %s21, 0
      %p76 = por %p74, %p75
      %p77 = scmp.ne.s32.totalorder %s69, %s71
      %p78 = scmp.eq.s32.totalorder %s26, 1
      %p79 = por %p77, %p78
      %p80 = scmp.ne.s32.totalorder %s71, %s72
      %p81 = scmp.eq.s32.totalorder %s26, 0
      %p82 = por %p80, %p81
      %p83 = scmp.ne.s32.totalorder %s71, %s72
      %p84 = scmp.eq.s32.totalorder %s27, 1
      %p85 = por %p83, %p84
      %p87 = scmp.ne.s32.totalorder %s72, %s86
      %p88 = scmp.eq.s32.totalorder %s27, 0
      %p89 = por %p87, %p88
      %s91 = sadd.s32 %s90, 1
      %p94 = scmp.eq.s32.totalorder %s21, 1
      %p95 = scmp.ne.s32.totalorder %s90, %s92
      %p96 = scmp.eq.s32.totalorder %s21, 0
      %p97 = por %p95, %p96
      %p98 = scmp.ne.s32.totalorder %s90, %s92
      %p99 = scmp.eq.s32.totalorder %s26, 1
      %p100 = por %p98, %p99
      %p101 = scmp.ne.s32.totalorder %s92, %s93
      %p102 = scmp.eq.s32.totalorder %s26, 0
      %p103 = por %p101, %p102
      %p104 = scmp.ne.s32.totalorder %s92, %s93
      %p105 = scmp.eq.s32.totalorder %s27, 1
      %p106 = por %p104, %p105
      %p108 = scmp.ne.s32.totalorder %s93, %s107
      %p109 = scmp.eq.s32.totalorder %s27, 0
      %p110 = por %p108, %p109
      %s112 = sadd.s32 %s111, 1
      %p115 = scmp.eq.s32.totalorder %s21, 1
      %p116 = scmp.ne.s32.totalorder %s111, %s113
      %p117 = scmp.eq.s32.totalorder %s21, 0
      %p118 = por %p116, %p117
      %p119 = scmp.ne.s32.totalorder %s111, %s113
      %p120 = scmp.eq.s32.totalorder %s26, 1
      %p121 = por %p119, %p120
      %p122 = scmp.ne.s32.totalorder %s113, %s114
      %p123 = scmp.eq.s32.totalorder %s26, 0
      %p124 = por %p122, %p123
      %p125 = scmp.ne.s32.totalorder %s113, %s114
      %p126 = scmp.eq.s32.totalorder %s27, 1
      %p127 = por %p125, %p126
      %p129 = scmp.ne.s32.totalorder %s114, %s128
      %p130 = scmp.eq.s32.totalorder %s27, 0
      %p131 = por %p129, %p130
      %s133 = sadd.s32 %s132, 1
      %p136 = scmp.eq.s32.totalorder %s21, 1
      %p137 = scmp.ne.s32.totalorder %s132, %s134
      %p138 = scmp.eq.s32.totalorder %s21, 0
      %p139 = por %p137, %p138
      %p140 = scmp.ne.s32.totalorder %s132, %s134
      %p141 = scmp.eq.s32.totalorder %s26, 1
      %p142 = por %p140, %p141
      %p143 = scmp.ne.s32.totalorder %s134, %s135
      %p144 = scmp.eq.s32.totalorder %s26, 0
      %p145 = por %p143, %p144
      %p146 = scmp.ne.s32.totalorder %s134, %s135
      %p147 = scmp.eq.s32.totalorder %s27, 1
      %p148 = por %p146, %p147
      %p150 = scmp.ne.s32.totalorder %s135, %s149
      %p151 = scmp.eq.s32.totalorder %s27, 0
      %p152 = por %p150, %p151
      %s153 = ssub.s32 %s29, %s36
      %p154 = scmp.eq.s32.totalorder %s153, 0
      %s156 = sadd.s32 %s155, 1
      %s157 = scalar_select %p154, %s155, %s156
      %p160 = pneg %p154
      %p161 = scmp.eq.s32.totalorder %s21, 1
      %p162 = por %p160, %p161
      %p163 = scmp.ne.s32.totalorder %s155, %s158
      %p164 = scmp.eq.s32.totalorder %s21, 0
      %p165 = por %p163, %p164
      %p166 = scmp.ne.s32.totalorder %s155, %s158
      %p167 = scmp.eq.s32.totalorder %s26, 1
      %p168 = por %p166, %p167
      %p169 = scmp.ne.s32.totalorder %s158, %s159
      %p170 = scmp.eq.s32.totalorder %s26, 0
      %p171 = por %p169, %p170
      %p172 = scmp.ne.s32.totalorder %s158, %s159
      %p173 = scmp.eq.s32.totalorder %s27, 1
      %p174 = por %p172, %p173
      %p176 = scmp.ne.s32.totalorder %s159, %s175
      %p177 = scmp.eq.s32.totalorder %s27, 0
      %p178 = por %p176, %p177
      %s179 = ssub.s32 %s29, %s36
      %p180 = scmp.eq.s32.totalorder %s179, 0
      %s182 = sadd.s32 %s181, 1
      %s183 = scalar_select %p180, %s181, %s182
      %p186 = pneg %p180
      %p187 = scmp.eq.s32.totalorder %s21, 1
      %p188 = por %p186, %p187
      %p189 = scmp.ne.s32.totalorder %s181, %s184
      %p190 = scmp.eq.s32.totalorder %s21, 0
      %p191 = por %p189, %p190
      %p192 = scmp.ne.s32.totalorder %s181, %s184
      %p193 = scmp.eq.s32.totalorder %s26, 1
      %p194 = por %p192, %p193
      %p195 = scmp.ne.s32.totalorder %s184, %s185
      %p196 = scmp.eq.s32.totalorder %s26, 0
      %p197 = por %p195, %p196
      %p198 = scmp.ne.s32.totalorder %s184, %s185
      %p199 = scmp.eq.s32.totalorder %s27, 1
      %p200 = por %p198, %p199
      %p202 = scmp.ne.s32.totalorder %s185, %s201
      %p203 = scmp.eq.s32.totalorder %s27, 0
      %p204 = por %p202, %p203
      %s205 = ssub.s32 %s28, %s40
      %s206 = ssub.s32 %s29, %s36
      %s207 = sor.u32 %s205, %s206
      %p208 = scmp.eq.s32.totalorder %s207, 0
      %s210 = sadd.s32 %s209, 1
      %s211 = scalar_select %p208, %s209, %s210
      %p214 = pneg %p208
      %p215 = scmp.eq.s32.totalorder %s21, 1
      %p216 = por %p214, %p215
      %p217 = scmp.ne.s32.totalorder %s209, %s212
      %p218 = scmp.eq.s32.totalorder %s21, 0
      %p219 = por %p217, %p218
      %p220 = scmp.ne.s32.totalorder %s209, %s212
      %p221 = scmp.eq.s32.totalorder %s26, 1
      %p222 = por %p220, %p221
      %p223 = scmp.ne.s32.totalorder %s212, %s213
      %p224 = scmp.eq.s32.totalorder %s26, 0
      %p225 = por %p223, %p224
      %p226 = scmp.ne.s32.totalorder %s212, %s213
      %p227 = scmp.eq.s32.totalorder %s27, 1
      %p228 = por %p226, %p227
      %p230 = scmp.ne.s32.totalorder %s213, %s229
      %p231 = scmp.eq.s32.totalorder %s27, 0
      %p232 = por %p230, %p231
      %p233 = scmp.le.s32.totalorder 1, %s21
      %p234 = scmp.lt.s32.totalorder %s21, 3
      %p235 = pnand %p233, %p234
      %p236 = pneg %p235
      // Predicated region
      $region9: #{tpu_custom_call.1} parent=5 // pred_check
        _
      $region10: #{tpu_custom_call.1} parent=5 // pred_check_branch
        %238 = sbr.rel (%p235) target = $region12
      $region11: #{tpu_custom_call.1} parent=5 // pred_region
        %s239 = ssub.s32 %s21, 1
        // Predicated region
        $region13: #{tpu_custom_call.1} parent=11 // pred_check
          %p240 = pneg %p82
        $region14: #{tpu_custom_call.1} parent=11 // pred_check_branch
          %242 = sbr.rel (%p240) target = $region16
        $region15: #{tpu_custom_call.1} parent=11 // pred_region
          _
        $region16: #{tpu_custom_call.1} parent=11 // pred_fallthru
          _
        // Predicated region
        $region17: #{tpu_custom_call.1} parent=11 // pred_check
          %p243 = pneg %p103
        $region18: #{tpu_custom_call.1} parent=11 // pred_check_branch
          %245 = sbr.rel (%p243) target = $region20
        $region19: #{tpu_custom_call.1} parent=11 // pred_region
          %s247 = ssub.s32 16, 16
          %248 = vsyncadd [#allocation6], %s247
          %s250 = sshll.u32 [#allocation5], 4
          %s251 = int_to_ptr.vmem [resolvable:$true] %s250
          %253 = dma.hbm_to_vmem [thread:$0]  %s2, 16, %s251, [#allocation6]
        $region20: #{tpu_custom_call.1} parent=11 // pred_fallthru
          _
        // Predicated region
        $region21: #{tpu_custom_call.1} parent=11 // pred_check
          %p254 = pneg %p124
        $region22: #{tpu_custom_call.1} parent=11 // pred_check_branch
          %256 = sbr.rel (%p254) target = $region24
        $region23: #{tpu_custom_call.1} parent=11 // pred_region
          %s258 = ssub.s32 512, 512
          %259 = vsyncadd [#allocation6], %s258
          %s260 = sshll.u32 [#allocation7], 4
          %s261 = int_to_ptr.vmem [resolvable:$true] %s260
          %266 = dma.hbm_to_vmem [thread:$0]  %s3, 512, %s261, [#allocation6], 64, 64, 4
        $region24: #{tpu_custom_call.1} parent=11 // pred_fallthru
          _
        // Predicated region
        $region25: #{tpu_custom_call.1} parent=11 // pred_check
          %p267 = pneg %p145
        $region26: #{tpu_custom_call.1} parent=11 // pred_check_branch
          %269 = sbr.rel (%p267) target = $region28
        $region27: #{tpu_custom_call.1} parent=11 // pred_region
          %s271 = ssub.s32 512, 512
          %272 = vsyncadd [#allocation9], %s271
          %s273 = sshll.u32 [#allocation8], 4
          %s274 = int_to_ptr.vmem [resolvable:$true] %s273
          %279 = dma.hbm_to_vmem [thread:$0]  %s4, 512, %s274, [#allocation9], 64, 64, 4
        $region28: #{tpu_custom_call.1} parent=11 // pred_fallthru
          _
        // Predicated region
        $region29: #{tpu_custom_call.1} parent=11 // pred_check
          %p280 = pneg %p171
        $region30: #{tpu_custom_call.1} parent=11 // pred_check_branch
          %282 = sbr.rel (%p280) target = $region32
        $region31: #{tpu_custom_call.1} parent=11 // pred_region
          %p283 = scmp.lt.s32.totalorder %s31, 0
          %s284 = scalar_select %p283, %s31, 0
          %s285 = smul.addr %s284, 8
          %s286 = scalar_lea.vmem %s5, %s285
        $region32: #{tpu_custom_call.1} parent=11 // pred_fallthru
          _
        // Predicated region
        $region33: #{tpu_custom_call.1} parent=11 // pred_check
          %p287 = pneg %p197
        $region34: #{tpu_custom_call.1} parent=11 // pred_check_branch
          %289 = sbr.rel (%p287) target = $region36
        $region35: #{tpu_custom_call.1} parent=11 // pred_region
          %s291 = ssub.s32 128, 128
          %292 = vsyncadd [#allocation9], %s291
          %s293 = smul.addr %s31, 128
          %s294 = scalar_lea.hbm %s6, %s293
          %s296 = sshll.u32 [#allocation10], 4
          %s297 = int_to_ptr.vmem [resolvable:$true] %s296
          %299 = dma.hbm_to_vmem [thread:$0]  %s294, 128, %s297, [#allocation9]
        $region36: #{tpu_custom_call.1} parent=11 // pred_fallthru
          _
      $region12: #{tpu_custom_call.1} parent=5 // pred_fallthru
        _
      %p300 = scmp.lt.s32.totalorder %s21, 2
      // Predicated region
      $region37: #{tpu_custom_call.1} parent=5 // pred_check
        %p301 = pneg %p300
      $region38: #{tpu_custom_call.1} parent=5 // pred_check_branch
        %303 = sbr.rel (%p301) target = $region40
      $region39: #{tpu_custom_call.1} parent=5 // pred_region
        // Predicated region
        $region41: #{tpu_custom_call.1} parent=39 // pred_check
          %p304 = pneg %p55
        $region42: #{tpu_custom_call.1} parent=39 // pred_check_branch
          %306 = sbr.rel (%p304) target = $region44
        $region43: #{tpu_custom_call.1} parent=39 // pred_region
          %s307 = sand.u32 %s45, 1
          %s308 = scalar_lea.sflag [#allocation3], %s307
          %s309 = sand.u32 %s45, 1
          %s310 = smul.addr %s309, 8
          %s311 = scalar_lea.vmem [#allocation2], %s310
          %s313 = ssub.s32 128, 128
          %314 = vsyncadd %s308, %s313
          %s315 = sadd.s32 %s29, %s28
          %s316 = smul.addr %s315, 128
          %s317 = scalar_lea.hbm %s0, %s316
          %s319 = sshll.u32 %s311, 4
          %s320 = int_to_ptr.vmem [resolvable:$true] %s319
          %322 = dma.hbm_to_vmem [thread:$0]  %s317, 128, %s320, %s308
        $region44: #{tpu_custom_call.1} parent=39 // pred_fallthru
          _
      $region40: #{tpu_custom_call.1} parent=5 // pred_fallthru
        _
      %p323 = scmp.le.s32.totalorder 1, %s21
      %p324 = scmp.lt.s32.totalorder %s21, 3
      %p325 = pnand %p323, %p324
      %p326 = pneg %p325
      // Predicated region
      $region45: #{tpu_custom_call.1} parent=5 // pred_check
        _
      $region46: #{tpu_custom_call.1} parent=5 // pred_check_branch
        %328 = sbr.rel (%p325) target = $region48
      $region47: #{tpu_custom_call.1} parent=5 // pred_region
        %s329 = ssub.s32 %s21, 1
        %s330 = sand.u32 %s48, 1
        %s331 = scalar_lea.sflag [#allocation3], %s330
        %s332 = sand.u32 %s48, 1
        %s333 = smul.addr %s332, 8
        %s334 = scalar_lea.vmem [#allocation2], %s333
        // Predicated region
        $region49: #{tpu_custom_call.1} parent=47 // pred_check
          %p335 = pneg %p61
        $region50: #{tpu_custom_call.1} parent=47 // pred_check_branch
          %337 = sbr.rel (%p335) target = $region52
        $region51: #{tpu_custom_call.1} parent=47 // pred_region
          %338 = dma.done %s331, 128
        $region52: #{tpu_custom_call.1} parent=47 // pred_fallthru
          _
        // Predicated region
        $region53: #{tpu_custom_call.1} parent=47 // pred_check
          %p339 = pneg %p103
        $region54: #{tpu_custom_call.1} parent=47 // pred_check_branch
          %341 = sbr.rel (%p339) target = $region56
        $region55: #{tpu_custom_call.1} parent=47 // pred_region
          %342 = dma.done [#allocation6], 16
        $region56: #{tpu_custom_call.1} parent=47 // pred_fallthru
          _
        // Predicated region
        $region57: #{tpu_custom_call.1} parent=47 // pred_check
          %p343 = pneg %p124
        $region58: #{tpu_custom_call.1} parent=47 // pred_check_branch
          %345 = sbr.rel (%p343) target = $region60
        $region59: #{tpu_custom_call.1} parent=47 // pred_region
          %346 = dma.done [#allocation6], 512
        $region60: #{tpu_custom_call.1} parent=47 // pred_fallthru
          _
        // Predicated region
        $region61: #{tpu_custom_call.1} parent=47 // pred_check
          %p347 = pneg %p145
        $region62: #{tpu_custom_call.1} parent=47 // pred_check_branch
          %349 = sbr.rel (%p347) target = $region64
        $region63: #{tpu_custom_call.1} parent=47 // pred_region
          %350 = dma.done [#allocation9], 512
        $region64: #{tpu_custom_call.1} parent=47 // pred_fallthru
          _
        // Predicated region
        $region65: #{tpu_custom_call.1} parent=47 // pred_check
          %p351 = pneg %p197
        $region66: #{tpu_custom_call.1} parent=47 // pred_check_branch
          %353 = sbr.rel (%p351) target = $region68
        $region67: #{tpu_custom_call.1} parent=47 // pred_region
          %354 = dma.done [#allocation9], 128
        $region68: #{tpu_custom_call.1} parent=47 // pred_fallthru
          _
        %s355 = sand.u32 %s48, 1
        %s356 = scalar_lea.sflag [#allocation3], %s355
        %s357 = sand.u32 %s48, 1
        %s358 = smul.addr %s357, 8
        %s359 = scalar_lea.vmem [#allocation2], %s358
        %p360 = pneg %p61
        %p361 = pneg %p58
        %p362 = pneg %p82
        %p363 = pneg %p79
        %p364 = pneg %p103
        %p365 = pneg %p100
        %p366 = pneg %p124
        %p367 = pneg %p121
        %p368 = pneg %p145
        %p369 = pneg %p142
        %p370 = scmp.lt.s32.totalorder %s31, 0
        %s371 = scalar_select %p370, %s31, 0
        %s372 = smul.addr %s371, 8
        %s373 = scalar_lea.vmem %s5, %s372
        %p374 = pneg %p171
        %p375 = pneg %p168
        %p376 = pneg %p197
        %p377 = pneg %p194
        %p378 = pneg %p225
        %p379 = pneg %p222
        %s380 = sand.u32 %s212, 1
        %s381 = scalar_lea.sflag [#allocation4], %s380
        %s382 = sand.u32 %s212, 1
        %s383 = smul.addr %s382, 4
        %s384 = scalar_lea.vmem [#allocation11], %s383
        %p385 = scmp.lt.s32.totalorder %s31, 0
        %s386 = scalar_select %p385, %s31, 0
        %s387 = smul.addr %s386, 8
        %s388 = scalar_lea.vmem %s5, %s387
        %v390 = vld [vmem:[%s334] sm:$0xff]
        %v391 = vld [vmem:[%s1] sm:$0x1]
        %v392 = vld [vmem:[#allocation5] sm:$0x1]
        %vm393 = vcmask 523264
        %v394 = vsel %vm393, %v390, 0.0
        %395 = vadd.xlane.f32.xlu0 %v394
        %v396 = vpop.xlane.xlu0 %395
        %v397 = vrcp.pop 64.0
        %v398 = vmul.f32 %v396, %v397
        %v399 = vsub.f32 %v390, %v398
        %v400 = vmul.f32 %v399, %v399
        %v401 = vsel %vm393, %v400, 0.0
        %402 = vadd.xlane.f32.xlu0 %v401
        %v403 = vpop.xlane.xlu0 %402
        %v404 = vmul.f32 %v403, %v397
        %v405 = vadd.f32 %v404, 1e-06
        %v406 = vrsqrt.pop %v405
        %v407 = vmul.f32 %v399, %v406
        %v409 = vlaneseq
        %v410 = vshrl.u32 %v409, 7
        %v411 = vsub.s32 0, %v410
        %v412 = vrot.slane %v391, %v411
        %v414 = vmul.f32 %v407, %v412
        %v416 = vlaneseq
        %v417 = vshrl.u32 %v416, 7
        %v418 = vsub.s32 0, %v417
        %v419 = vrot.slane %v392, %v418
        %v421 = vadd.f32 %v414, %v419
        %v422 = vpack.c.bf16 %v421, %v421
        %v423 = vld [vmem:[#allocation7] sm:$0xf]
        %v424 = vld [vmem:[#allocation7 + $0x4] sm:$0xf]
        %v425 = vld [vmem:[#allocation7 + $0x8] sm:$0xf]
        %v426 = vld [vmem:[#allocation7 + $0xc] sm:$0xf]
        %v427 = vld [vmem:[#allocation7 + $0x10] sm:$0xf]
        %v428 = vld [vmem:[#allocation7 + $0x14] sm:$0xf]
        %v429 = vld [vmem:[#allocation7 + $0x18] sm:$0xf]
        %v430 = vld [vmem:[#allocation7 + $0x1c] sm:$0xf]
        %v439 = vunpack.c.l.b16 %v423
        %v440 = vunpack.c.l.b16 %v424
        %v441 = vunpack.c.l.b16 %v425
        %v442 = vunpack.c.l.b16 %v426
        %v443 = vunpack.c.l.b16 %v427
        %v444 = vunpack.c.l.b16 %v428
        %v445 = vunpack.c.l.b16 %v429
        %v446 = vunpack.c.l.b16 %v430
        %v447 = vpack.c.b16 %v440, %v439
        %v448 = vpack.c.b16 %v442, %v441
        %v449 = vpack.c.b16 %v444, %v443
        %v450 = vpack.c.b16 %v446, %v445
        %v456 = vsel %vm393, %v422, 0
        %458 = vmatprep.subr.bf16.mxu0 0
        %459 = vmatpush1.bf16.msra.mxu0 0
        %460 = vmatprep.subr.bf16.mxu0 0
        %461 = vmatpush1.bf16.msra.mxu0 0
        %462 = vmatprep.subr.bf16.mxu0 0
        %463 = vmatpush1.bf16.msra.mxu0 0
        %464 = vmatprep.subr.bf16.mxu0 0
        %465 = vmatpush1.bf16.msra.mxu0 0
        %466 = vmatprep.subr.bf16.mxu0 0
        %467 = vmatpush1.bf16.msra.mxu0 %v450
        %468 = vmatprep.subr.bf16.mxu0 0
        %469 = vmatpush1.bf16.msra.mxu0 %v449
        %470 = vmatprep.subr.bf16.mxu0 0
        %471 = vmatpush1.bf16.msra.mxu0 %v448
        %472 = vmatprep.subr.bf16.mxu0 0
        %473 = vmatpush1.bf16.msra.mxu0 %v447
        %474 = vmatprep.subr.bf16.mxu0 0
        %475 = vmatpush2.bf16.msra.mxu0 0
        %476 = vmatprep.subr.bf16.mxu0 0
        %477 = vmatpush2.bf16.msra.mxu0 0
        %478 = vmatprep.subr.bf16.mxu0 0
        %479 = vmatpush2.bf16.msra.mxu0 0
        %480 = vmatprep.subr.bf16.mxu0 0
        %481 = vmatpush2.bf16.msra.mxu0 0
        %482 = vmatprep.subr.bf16.mxu0 0
        %483 = vmatpush2.bf16.msra.mxu0 0
        %484 = vmatprep.subr.bf16.mxu0 0
        %485 = vmatpush2.bf16.msra.mxu0 0
        %486 = vmatprep.subr.bf16.mxu0 0
        %487 = vmatpush2.bf16.msra.mxu0 0
        %488 = vmatprep.subr.bf16.mxu0 0
        %489 = vmatpush2.bf16.msra.mxu0 0
        %490 = vmatprep.mubr.bf16.mxu0 0
        %491 = vmatmul.mubr.bf16.gmra.mxu0 %v456
        %v492 = vpop.f32.mrf.mxu0
        %v493 = vadd.f32 0.0, %v492
        %v494 = vpop.f32.mrf.mxu0
        %v495 = vpop.f32.mrf.mxu0
        %v496 = vpop.f32.mrf.mxu0
        %497 = vdwg.mxu0
        %v498 = vld [vmem:[#allocation8] sm:$0xf]
        %v499 = vld [vmem:[#allocation8 + $0x4] sm:$0xf]
        %v500 = vld [vmem:[#allocation8 + $0x8] sm:$0xf]
        %v501 = vld [vmem:[#allocation8 + $0xc] sm:$0xf]
        %v502 = vld [vmem:[#allocation8 + $0x10] sm:$0xf]
        %v503 = vld [vmem:[#allocation8 + $0x14] sm:$0xf]
        %v504 = vld [vmem:[#allocation8 + $0x18] sm:$0xf]
        %v505 = vld [vmem:[#allocation8 + $0x1c] sm:$0xf]
        %v514 = vunpack.c.l.b16 %v498
        %v515 = vunpack.c.l.b16 %v499
        %v516 = vunpack.c.l.b16 %v500
        %v517 = vunpack.c.l.b16 %v501
        %v518 = vunpack.c.l.b16 %v502
        %v519 = vunpack.c.l.b16 %v503
        %v520 = vunpack.c.l.b16 %v504
        %v521 = vunpack.c.l.b16 %v505
        %v522 = vpack.c.b16 %v515, %v514
        %v523 = vpack.c.b16 %v517, %v516
        %v524 = vpack.c.b16 %v519, %v518
        %v525 = vpack.c.b16 %v521, %v520
        %530 = vmatprep.subr.bf16.mxu0 0
        %531 = vmatpush1.bf16.msra.mxu0 0
        %532 = vmatprep.subr.bf16.mxu0 0
        %533 = vmatpush1.bf16.msra.mxu0 0
        %534 = vmatprep.subr.bf16.mxu0 0
        %535 = vmatpush1.bf16.msra.mxu0 0
        %536 = vmatprep.subr.bf16.mxu0 0
        %537 = vmatpush1.bf16.msra.mxu0 0
        %538 = vmatprep.subr.bf16.mxu0 0
        %539 = vmatpush1.bf16.msra.mxu0 %v525
        %540 = vmatprep.subr.bf16.mxu0 0
        %541 = vmatpush1.bf16.msra.mxu0 %v524
        %542 = vmatprep.subr.bf16.mxu0 0
        %543 = vmatpush1.bf16.msra.mxu0 %v523
        %544 = vmatprep.subr.bf16.mxu0 0
        %545 = vmatpush1.bf16.msra.mxu0 %v522
        %546 = vmatprep.subr.bf16.mxu0 0
        %547 = vmatpush2.bf16.msra.mxu0 0
        %548 = vmatprep.subr.bf16.mxu0 0
        %549 = vmatpush2.bf16.msra.mxu0 0
        %550 = vmatprep.subr.bf16.mxu0 0
        %551 = vmatpush2.bf16.msra.mxu0 0
        %552 = vmatprep.subr.bf16.mxu0 0
        %553 = vmatpush2.bf16.msra.mxu0 0
        %554 = vmatprep.subr.bf16.mxu0 0
        %555 = vmatpush2.bf16.msra.mxu0 0
        %556 = vmatprep.subr.bf16.mxu0 0
        %557 = vmatpush2.bf16.msra.mxu0 0
        %558 = vmatprep.subr.bf16.mxu0 0
        %559 = vmatpush2.bf16.msra.mxu0 0
        %560 = vmatprep.subr.bf16.mxu0 0
        %561 = vmatpush2.bf16.msra.mxu0 0
        %562 = vmatprep.mubr.bf16.mxu0 0
        %563 = vmatmul.mubr.bf16.gmra.mxu0 %v456
        %v564 = vpop.f32.mrf.mxu0
        %v565 = vadd.f32 0.0, %v564
        %v566 = vpop.f32.mrf.mxu0
        %v567 = vpop.f32.mrf.mxu0
        %v568 = vpop.f32.mrf.mxu0
        %569 = vdwg.mxu0
        %v570 = vld [vmem:[%s388] sm:$0xff]
        %v571 = vmul.f32 %v493, %v570
        %v572 = vld [vmem:[#allocation10] sm:$0xff]
        %v573 = vmul.f32 %v565, %v572
        %v574 = vadd.f32 %v571, %v573
        %v575 = vpack.c.bf16 %v574, %v574
        %vm576 = vcmask 519168
        %577 = vst.msk [vmem:[%s384] sm:$0xf] %vm576, %v575
        %s578 = sand.u32 %s212, 1
        %s579 = scalar_lea.sflag [#allocation4], %s578
        %s580 = sand.u32 %s212, 1
        %s581 = smul.addr %s580, 4
        %s582 = scalar_lea.vmem [#allocation11], %s581
        // Predicated region
        $region69: #{tpu_custom_call.1} parent=47 // pred_check
          %p583 = pneg %p222
        $region70: #{tpu_custom_call.1} parent=47 // pred_check_branch
          %585 = sbr.rel (%p583) target = $region72
        $region71: #{tpu_custom_call.1} parent=47 // pred_region
          %s587 = ssub.s32 64, 64
          %588 = vsyncadd %s579, %s587
          %s589 = sadd.s32 %s31, %s30
          %s590 = smul.addr %s589, 64
          %s591 = scalar_lea.hbm %s7, %s590
          %s593 = sshll.u32 %s582, 4
          %s594 = int_to_ptr.vmem [resolvable:$true] %s593
          %596 = dma.vmem_to_hbm [thread:$0]  %s594, 64, %s591, %s579
        $region72: #{tpu_custom_call.1} parent=47 // pred_fallthru
          _
      $region48: #{tpu_custom_call.1} parent=5 // pred_fallthru
        _
      %p597 = scmp.le.s32.totalorder 2, %s21
      // Predicated region
      $region73: #{tpu_custom_call.1} parent=5 // pred_check
        %p598 = pneg %p597
      $region74: #{tpu_custom_call.1} parent=5 // pred_check_branch
        %600 = sbr.rel (%p598) target = $region76
      $region75: #{tpu_custom_call.1} parent=5 // pred_region
        %s601 = ssub.s32 %s21, 2
        // Predicated region
        $region77: #{tpu_custom_call.1} parent=75 // pred_check
          %p602 = pneg %p228
        $region78: #{tpu_custom_call.1} parent=75 // pred_check_branch
          %604 = sbr.rel (%p602) target = $region80
        $region79: #{tpu_custom_call.1} parent=75 // pred_region
          %s605 = sand.u32 %s213, 1
          %s606 = scalar_lea.sflag [#allocation4], %s605
          %s607 = sand.u32 %s213, 1
          %s608 = smul.addr %s607, 4
          %s609 = scalar_lea.vmem [#allocation11], %s608
          %610 = dma.done %s606, 64
        $region80: #{tpu_custom_call.1} parent=75 // pred_fallthru
          _
      $region76: #{tpu_custom_call.1} parent=5 // pred_fallthru
        _
    $region6: #{tpu_custom_call.1} parent=1 // loop_footer
      %s25 = sadd.s32 1, %s21
    $region7: #{tpu_custom_call.1} parent=1 // loop_footer_branch
      %20 = sbr.rel target = $region3
    $region8: #{tpu_custom_call.1} parent=1 // loop_exit
      _
    %611 = vsyncpa [#allocation3], 1
    %s612 = scalar_lea.sflag [#allocation3], 1
    %613 = vsyncpa %s612, 1
    %614 = vsyncpa [#allocation6], 1
    %615 = vsyncpa [#allocation9], 1
    %616 = vsyncpa [#allocation4], 1
    %s617 = scalar_lea.sflag [#allocation4], 1
    %618 = vsyncpa %s617, 1

</llo_original>
